<compile_context>
chip_gen: v6e
topology: v6e:2x2x1
jax: 0.10.0
libtpu: 0.0.40
codegen_flags: <defaults>
</compile_context>

<pallas_src>
import functools
import math

import jax
import jax.numpy as jnp
from jax.experimental import pallas as pl
from jax.experimental.pallas import tpu as pltpu


def _round_up(x, m):
    return ((x + m - 1) // m) * m


def _triplet_kernel(feat_row_ref, feat_colT_ref, row_sq_ref, col_sq_ref,
                    lab_anchor_ref, lab_cand_ref, out_ref,
                    pos_ref, neg_ref, rmax_ref, *,
                    margin, squared, eps, n_actual, n_padded):
    i = pl.program_id(0)          # anchor-row tile      ("parallel")
    k = pl.program_id(1)          # candidate-col tile   ("arbitrary" reduction)
    tm = feat_row_ref.shape[0]
    tk = feat_colT_ref.shape[1]

    @pl.when(k == 0)
    def _init():
        pos_ref[...] = jnp.full((tm, 1), -jnp.inf, jnp.float32)
        neg_ref[...] = jnp.full((tm, 1), jnp.inf, jnp.float32)
        rmax_ref[...] = jnp.full((tm, 1), -jnp.inf, jnp.float32)

    # Gram tile on the MXU in the *input* dtype (bf16 native rate), f32 accum.
    # The RHS already carries the -2 factor (folded in the wrapper), so the
    # squared distance is a simple broadcast add with the precomputed norms.
    ab = jnp.dot(feat_row_ref[...], feat_colT_ref[...],
                 preferred_element_type=jnp.float32)              # (tm, tk)
    d2 = jnp.maximum(row_sq_ref[...] + ab + col_sq_ref[...], 0.0)  # (tm, tk)

    # Global indices / masks for this tile.
    row_ids = i * tm + jax.lax.broadcasted_iota(jnp.int32, (tm, 1), 0)
    col_ids = k * tk + jax.lax.broadcasted_iota(jnp.int32, (1, tk), 1)
    diag = row_ids == col_ids                                      # (tm, tk)
    same = lab_anchor_ref[...] == lab_cand_ref[...]                # (tm, tk)

    # PyTorch's a^2 - 2ab + b^2 cancels exactly on the diagonal -> force 0.
    d2 = jnp.where(diag, 0.0, d2)
    pos_val = jnp.where(same & (~diag), d2, -jnp.inf)   # valid positives
    neg_val = jnp.where(same, jnp.inf, d2)              # valid negatives

    def _accumulate(pv, nv, rm):
        pos_ref[...] = jnp.maximum(pos_ref[...],
                                   jnp.max(pv, axis=1, keepdims=True))
        neg_ref[...] = jnp.minimum(neg_ref[...],
                                   jnp.min(nv, axis=1, keepdims=True))
        rmax_ref[...] = jnp.maximum(rmax_ref[...],
                                    jnp.max(rm, axis=1, keepdims=True))

    if n_actual != n_padded:
        # Only column tiles at/after this (static) index contain padded cols.
        pad_tile_start = n_actual // tk

        @pl.when(k < pad_tile_start)
        def _interior():                       # fast path: no padding mask
            _accumulate(pos_val, neg_val, d2)

        @pl.when(k >= pad_tile_start)
        def _with_padding():                   # boundary / fully-padded tiles
            valid = col_ids < n_actual
            _accumulate(jnp.where(valid, pos_val, -jnp.inf),
                        jnp.where(valid, neg_val, jnp.inf),
                        jnp.where(valid, d2, -jnp.inf))
    else:
        _accumulate(pos_val, neg_val, d2)

    @pl.when(k == pl.num_programs(1) - 1)
    def _finalize():
        pos_sq = pos_ref[...]   # -inf if the anchor has no valid positive
        neg_sq = neg_ref[...]   # +inf if the anchor has no valid negative
        rmx_sq = rmax_ref[...]  # row max of squared distances (diag included)
        if squared:
            # PyTorch min-over-shifted == min(neg_min, 0 + rowmax): the
            # diagonal (same-label, distance 0) is always the invalid-set min.
            toughest_pos = jnp.maximum(pos_sq, 0.0)
            toughest_neg = jnp.minimum(neg_sq, rmx_sq)
        else:
            # sqrt deferred to O(TM) values (monotone); rows without a valid
            # positive give exactly 0 like PyTorch's masked max.
            toughest_pos = jnp.where(pos_sq >= 0.0,
                                     jnp.sqrt(pos_sq + eps), 0.0)
            toughest_neg = jnp.minimum(
                jnp.sqrt(neg_sq + eps),
                math.sqrt(eps) + jnp.sqrt(rmx_sq + eps))
        out_ref[...] = jnp.maximum(toughest_pos - toughest_neg + margin, 0.0)


def batch_hard_triplet_loss(feat_vecs, labels, *, margin=1.0, squared=False,
                            agg='mean', eps=1e-8, block_m=256, block_k=1024,
                            vmem_limit_bytes=None):
    """feat_vecs: (N, D) float (f32 or bf16); labels: (1, N) or (N,) int.

    Defaults target v6e/v7x (256-wide MXU).  On v5e prefer block_m=128 and
    block_k in [256, 512].  On v7x, for medium N, pick block_m so the number
    of row tiles is even (>=2) so the "parallel" axis splits across both
    TensorCores, and raise vmem_limit_bytes only within the 64 MiB ceiling.
    """
    n, d = feat_vecs.shape
    labels = jnp.asarray(labels).reshape(-1).astype(jnp.int32)
    assert labels.shape[0] == n

    # Tile-size selection (block_m multiple of 8; block_k multiple of 128 when
    # column tiling is actually used).  Pad N so both tile sizes divide it.
    block_m = max(8, _round_up(block_m, 8))
    tm = min(block_m, _round_up(n, 8))
    if n <= block_k:
        n_pad = _round_up(n, tm)
        tk = n_pad
    else:
        assert block_k % 128 == 0, "block_k must be a multiple of 128"
        tk = block_k
        n_pad = _round_up(n, math.lcm(tm, tk))

    if n_pad != n:
        feat_p = jnp.zeros((n_pad, d), feat_vecs.dtype).at[:n, :].set(feat_vecs)
        lab_p = jnp.full((n_pad,), -1, jnp.int32).at[:n].set(labels)
    else:
        feat_p, lab_p = feat_vecs, labels

    # One-time O(N*D) prep that replaces O(N^2/TM * D) per-step in-kernel work:
    #   * squared norms in f32 (fed as row- and column-broadcast inputs)
    #   * -2 folded into the transposed MXU operand (exact power-of-two scale)
    sq = jnp.sum(jnp.square(feat_p.astype(jnp.float32)), axis=1)    # (n_pad,)
    row_sq = sq.reshape(n_pad, 1)
    col_sq = sq.reshape(1, n_pad)
    feat_t = (-2.0 * feat_p).T                                      # (d, n_pad)
    lab_anchor = lab_p.reshape(n_pad, 1)
    lab_cand = lab_p.reshape(1, n_pad)

    grid = (n_pad // tm, n_pad // tk)
    kernel = functools.partial(
        _triplet_kernel, margin=float(margin), squared=bool(squared),
        eps=float(eps), n_actual=n, n_padded=n_pad)

    cp_kwargs = dict(dimension_semantics=("parallel", "arbitrary"))
    if vmem_limit_bytes is not None:
        cp_kwargs["vmem_limit_bytes"] = int(vmem_limit_bytes)

    per_anchor = pl.pallas_call(
        kernel,
        out_shape=jax.ShapeDtypeStruct((n_pad, 1), jnp.float32),
        grid_spec=pltpu.PrefetchScalarGridSpec(
            num_scalar_prefetch=0,
            grid=grid,
            in_specs=[
                pl.BlockSpec((tm, d), lambda i, k: (i, 0)),   # anchor rows
                pl.BlockSpec((d, tk), lambda i, k: (0, k)),   # -2 * cols^T
                pl.BlockSpec((tm, 1), lambda i, k: (i, 0)),   # row sq norms
                pl.BlockSpec((1, tk), lambda i, k: (0, k)),   # col sq norms
                pl.BlockSpec((tm, 1), lambda i, k: (i, 0)),   # anchor labels
                pl.BlockSpec((1, tk), lambda i, k: (0, k)),   # candidate labels
            ],
            out_specs=pl.BlockSpec((tm, 1), lambda i, k: (i, 0)),
            scratch_shapes=[pltpu.VMEM((tm, 1), jnp.float32)] * 3,
        ),
        compiler_params=pltpu.CompilerParams(**cp_kwargs),
    )(feat_p, feat_t, row_sq, col_sq, lab_anchor, lab_cand)

    per_anchor = per_anchor[:n, 0]
    if agg == 'mean':
        return jnp.mean(per_anchor)
    if agg == 'sum':
        return jnp.sum(per_anchor)
    # Any other agg: PyTorch returns the unaggregated per-anchor loss vector.
    return per_anchor


def _reference_per_anchor(feat_vecs, labels, margin=1.0, squared=False,
                          eps=1e-8):
    """Pure-JAX mirror of the PyTorch forward (per-anchor triplet values)."""
    f = feat_vecs.astype(jnp.float32)
    ab = jnp.dot(f, f.T, precision=jax.lax.Precision.HIGHEST)
    diag = jnp.diag(ab)
    d = jnp.maximum(diag[:, None] - 2.0 * ab + diag[None, :], 0.0)
    if not squared:
        d = jnp.sqrt(d + eps)
    lab = jnp.asarray(labels).reshape(-1)
    eq = lab[:, None] == lab[None, :]
    nd = ~jnp.eye(lab.shape[0], dtype=bool)
    pos = (eq & nd).astype(jnp.float32)
    neg = ((~eq) & nd).astype(jnp.float32)
    tp = jnp.max(d * pos, axis=1)
    rm = jnp.max(d, axis=1, keepdims=True)
    tn = jnp.min(d + rm * (1.0 - neg), axis=1)
    return jnp.maximum(tp - tn + margin, 0.0)


if __name__ == "__main__":
    key = jax.random.PRNGKey(0)
    k1, k2, k3 = jax.random.split(key, 3)

    # ---- test 1: tiny PK batch, single tile, f32 (original example) ----
    N, D = 8, 32
    feat = jax.random.normal(k1, (N, D), dtype=jnp.float32)
    labels = jnp.array([[0, 0, 0, 0, 1, 1, 1, 1]], dtype=jnp.int32)
    out = jax.block_until_ready(
        batch_hard_triplet_loss(feat, labels, margin=1.0, squared=False))
    ref = jnp.mean(_reference_per_anchor(feat, labels, margin=1.0))
    assert jnp.allclose(out, ref, rtol=2e-3, atol=2e-3), (out, ref)

    # bf16 features: native-rate MXU path, f32 accumulation.
    out_bf = jax.block_until_ready(
        batch_hard_triplet_loss(feat.astype(jnp.bfloat16), labels))
    ref_bf = jnp.mean(_reference_per_anchor(feat.astype(jnp.bfloat16), labels))
    assert jnp.allclose(out_bf, ref_bf, rtol=5e-3, atol=5e-3), (out_bf, ref_bf)

    # ---- test 2: 2x2 tiled grid with a padded boundary column tile,
    #              squared distances, sum aggregation ----
    N2, D2 = 200, 128
    feat2 = jax.random.normal(k2, (N2, D2), dtype=jnp.float32)
    labels2 = jnp.arange(N2, dtype=jnp.int32) // 25          # 8 ids x 25
    out2 = jax.block_until_ready(
        batch_hard_triplet_loss(feat2, labels2, margin=0.5, squared=True,
                                agg='sum', block_m=128, block_k=128))
    ref2 = jnp.sum(_reference_per_anchor(feat2, labels2, margin=0.5,
                                         squared=True))
    assert jnp.allclose(out2, ref2, rtol=2e-3, atol=1e-1), (out2, ref2)

    # ---- test 3: multi-tile, unsquared, singleton class (anchor with no
    #              valid positive) + a fully padded trailing column tile ----
    N3, D3 = 200, 64
    feat3 = jax.random.normal(k3, (N3, D3), dtype=jnp.float32)
    labels3 = (jnp.arange(N3, dtype=jnp.int32) // 25).at[-1].set(100)
    out3 = jax.block_until_ready(
        batch_hard_triplet_loss(feat3, labels3, block_m=192, block_k=128))
    ref3 = jnp.mean(_reference_per_anchor(feat3, labels3))
    assert jnp.allclose(out3, ref3, rtol=2e-3, atol=2e-3), (out3, ref3)

    # ---- test 4: all labels identical (no valid negative anywhere) ----
    feat4 = jax.random.normal(jax.random.PRNGKey(7), (8, 32), jnp.float32)
    labels4 = jnp.zeros((1, 8), jnp.int32)
    out4 = jax.block_until_ready(batch_hard_triplet_loss(feat4, labels4))
    ref4 = jnp.mean(_reference_per_anchor(feat4, labels4))
    assert jnp.allclose(out4, ref4, rtol=2e-3, atol=2e-3), (out4, ref4)

    # ---- test 5: non-mean/sum agg returns the per-anchor vector (PyTorch) ----
    vec = jax.block_until_ready(
        batch_hard_triplet_loss(feat, labels, agg='none'))
    ref_vec = _reference_per_anchor(feat, labels)
    assert vec.shape == (N,)
    assert jnp.allclose(vec, ref_vec, rtol=2e-3, atol=2e-3), (vec, ref_vec)

    print("KERNEL_OK")
</pallas_src>

<mosaic_0001>
module attributes {stable_mosaic.version = 11 : i64} {
  func.func @_triplet_kernel(%arg0: i32, %arg1: i32, %arg2: memref<8x32xf32, #tpu.memory_space<vmem>>, %arg3: memref<32x8xf32, #tpu.memory_space<vmem>>, %arg4: memref<8x1xf32, #tpu.memory_space<vmem>>, %arg5: memref<1x8xf32, #tpu.memory_space<vmem>>, %arg6: memref<8x1xi32, #tpu.memory_space<vmem>>, %arg7: memref<1x8xi32, #tpu.memory_space<vmem>>, %arg8: memref<8x1xf32, #tpu.memory_space<vmem>>, %arg9: memref<8x1xf32, #tpu.memory_space<vmem>>, %arg10: memref<8x1xf32, #tpu.memory_space<vmem>>, %arg11: memref<8x1xf32, #tpu.memory_space<vmem>>) attributes {dimension_semantics = [#tpu.dimension_semantics<parallel>, #tpu.dimension_semantics<arbitrary>], iteration_bounds = array<i64: 1, 1>, scalar_prefetch = 0 : i64, scratch_operands = 3 : i64, tpu.core_type = #tpu.core_type<tc>, window_params = [{transform_indices = @transform_0, window_bounds = array<i64: 8, 32>}, {transform_indices = @transform_1, window_bounds = array<i64: 32, 8>}, {transform_indices = @transform_2, window_bounds = array<i64: 8, 1>}, {transform_indices = @transform_3, window_bounds = array<i64: 1, 8>}, {transform_indices = @transform_4, window_bounds = array<i64: 8, 1>}, {transform_indices = @transform_5, window_bounds = array<i64: 1, 8>}, {transform_indices = @transform_6, window_bounds = array<i64: 8, 1>}]} {
    %c0_i32 = arith.constant 0 : i32
    %0 = arith.cmpi eq, %arg1, %c0_i32 : i32
    %1 = arith.extui %0 : i1 to i32
    %c0_i32_0 = arith.constant 0 : i32
    %2 = arith.cmpi ne, %1, %c0_i32_0 : i32
    scf.if %2 {
      %cst_35 = arith.constant 0xFF800000 : f32
      %56 = vector.broadcast %cst_35 : f32 to vector<8x1xf32>
      %c0_36 = arith.constant 0 : index
      %c0_37 = arith.constant 0 : index
      %57 = vector.load %arg9[%c0_36, %c0_37] : memref<8x1xf32, #tpu.memory_space<vmem>>, vector<8x1xf32>
      tpu.vector_store %arg9[%c0_36, %c0_37], %56 {strides = array<i32>} : memref<8x1xf32, #tpu.memory_space<vmem>>, vector<8x1xf32>,
      %cst_38 = arith.constant 0x7F800000 : f32
      %58 = vector.broadcast %cst_38 : f32 to vector<8x1xf32>
      %c0_39 = arith.constant 0 : index
      %c0_40 = arith.constant 0 : index
      %59 = vector.load %arg10[%c0_39, %c0_40] : memref<8x1xf32, #tpu.memory_space<vmem>>, vector<8x1xf32>
      tpu.vector_store %arg10[%c0_39, %c0_40], %58 {strides = array<i32>} : memref<8x1xf32, #tpu.memory_space<vmem>>, vector<8x1xf32>,
      %cst_41 = arith.constant 0xFF800000 : f32
      %60 = vector.broadcast %cst_41 : f32 to vector<8x1xf32>
      %c0_42 = arith.constant 0 : index
      %c0_43 = arith.constant 0 : index
      %61 = vector.load %arg11[%c0_42, %c0_43] : memref<8x1xf32, #tpu.memory_space<vmem>>, vector<8x1xf32>
      tpu.vector_store %arg11[%c0_42, %c0_43], %60 {strides = array<i32>} : memref<8x1xf32, #tpu.memory_space<vmem>>, vector<8x1xf32>,
    } else {
    }
    %c0 = arith.constant 0 : index
    %c0_1 = arith.constant 0 : index
    %3 = vector.load %arg2[%c0, %c0_1] : memref<8x32xf32, #tpu.memory_space<vmem>>, vector<8x32xf32>
    %c0_2 = arith.constant 0 : index
    %c0_3 = arith.constant 0 : index
    %4 = vector.load %arg3[%c0_2, %c0_3] : memref<32x8xf32, #tpu.memory_space<vmem>>, vector<32x8xf32>
    %cst = arith.constant dense<0.000000e+00> : vector<8x8xf32>
    %5 = tpu.matmul %3, %4, %cst {dimension_numbers = #tpu.dot_dimension_numbers<[1], [0], [0], [1], [0, 0, 1, 1], [], []>} : vector<8x32xf32>, vector<32x8xf32>, vector<8x8xf32> -> vector<8x8xf32>
    %c0_4 = arith.constant 0 : index
    %c0_5 = arith.constant 0 : index
    %6 = vector.load %arg4[%c0_4, %c0_5] : memref<8x1xf32, #tpu.memory_space<vmem>>, vector<8x1xf32>
    %7 = vector.broadcast %6 : vector<8x1xf32> to vector<8x8xf32>
    %8 = arith.addf %7, %5 : vector<8x8xf32>
    %c0_6 = arith.constant 0 : index
    %c0_7 = arith.constant 0 : index
    %9 = vector.load %arg5[%c0_6, %c0_7] : memref<1x8xf32, #tpu.memory_space<vmem>>, vector<1x8xf32>
    %10 = vector.broadcast %9 : vector<1x8xf32> to vector<8x8xf32>
    %11 = arith.addf %8, %10 : vector<8x8xf32>
    %cst_8 = arith.constant 0.000000e+00 : f32
    %12 = vector.broadcast %cst_8 : f32 to vector<8x8xf32>
    %13 = arith.maximumf %11, %12 : vector<8x8xf32>
    %c8_i32 = arith.constant 8 : i32
    %14 = arith.muli %arg0, %c8_i32 : i32
    %15 = tpu.iota {dimensions = array<i32: 0>} : vector<8x1xi32>
    %16 = vector.broadcast %14 : i32 to vector<8x1xi32>
    %17 = arith.addi %16, %15 : vector<8x1xi32>
    %c8_i32_9 = arith.constant 8 : i32
    %18 = arith.muli %arg1, %c8_i32_9 : i32
    %19 = tpu.iota {dimensions = array<i32: 1>} : vector<1x8xi32>
    %20 = vector.broadcast %18 : i32 to vector<1x8xi32>
    %21 = arith.addi %20, %19 : vector<1x8xi32>
    %22 = vector.broadcast %17 : vector<8x1xi32> to vector<8x8xi32>
    %23 = vector.broadcast %21 : vector<1x8xi32> to vector<8x8xi32>
    %24 = arith.cmpi eq, %22, %23 : vector<8x8xi32>
    %c0_10 = arith.constant 0 : index
    %c0_11 = arith.constant 0 : index
    %25 = vector.load %arg6[%c0_10, %c0_11] : memref<8x1xi32, #tpu.memory_space<vmem>>, vector<8x1xi32>
    %c0_12 = arith.constant 0 : index
    %c0_13 = arith.constant 0 : index
    %26 = vector.load %arg7[%c0_12, %c0_13] : memref<1x8xi32, #tpu.memory_space<vmem>>, vector<1x8xi32>
    %27 = vector.broadcast %25 : vector<8x1xi32> to vector<8x8xi32>
    %28 = vector.broadcast %26 : vector<1x8xi32> to vector<8x8xi32>
    %29 = arith.cmpi eq, %27, %28 : vector<8x8xi32>
    %cst_14 = arith.constant 0.000000e+00 : f32
    %30 = vector.broadcast %cst_14 : f32 to vector<8x8xf32>
    %31 = arith.select %24, %30, %13 : vector<8x8xi1>, vector<8x8xf32>
    %cst_15 = arith.constant dense<true> : vector<8x8xi1>
    %32 = arith.xori %24, %cst_15 : vector<8x8xi1>
    %33 = arith.andi %29, %32 : vector<8x8xi1>
    %cst_16 = arith.constant 0xFF800000 : f32
    %34 = vector.broadcast %cst_16 : f32 to vector<8x8xf32>
    %35 = arith.select %33, %31, %34 : vector<8x8xi1>, vector<8x8xf32>
    %cst_17 = arith.constant 0x7F800000 : f32
    %36 = vector.broadcast %cst_17 : f32 to vector<8x8xf32>
    %37 = arith.select %29, %36, %31 : vector<8x8xi1>, vector<8x8xf32>
    %c0_18 = arith.constant 0 : index
    %c0_19 = arith.constant 0 : index
    %38 = vector.load %arg9[%c0_18, %c0_19] : memref<8x1xf32, #tpu.memory_space<vmem>>, vector<8x1xf32>
    %cst_20 = arith.constant dense<0xFF800000> : vector<8xf32>
    %39 = vector.multi_reduction <maximumf>, %35, %cst_20 [1] : vector<8x8xf32> to vector<8xf32>
    %40 = vector.shape_cast %39 : vector<8xf32> to vector<8x1xf32>
    %41 = arith.maximumf %38, %40 : vector<8x1xf32>
    %c0_21 = arith.constant 0 : index
    %c0_22 = arith.constant 0 : index
    %42 = vector.load %arg9[%c0_21, %c0_22] : memref<8x1xf32, #tpu.memory_space<vmem>>, vector<8x1xf32>
    tpu.vector_store %arg9[%c0_21, %c0_22], %41 {strides = array<i32>} : memref<8x1xf32, #tpu.memory_space<vmem>>, vector<8x1xf32>,
    %c0_23 = arith.constant 0 : index
    %c0_24 = arith.constant 0 : index
    %43 = vector.load %arg10[%c0_23, %c0_24] : memref<8x1xf32, #tpu.memory_space<vmem>>, vector<8x1xf32>
    %cst_25 = arith.constant dense<0x7F800000> : vector<8xf32>
    %44 = vector.multi_reduction <minimumf>, %37, %cst_25 [1] : vector<8x8xf32> to vector<8xf32>
    %45 = vector.shape_cast %44 : vector<8xf32> to vector<8x1xf32>
    %46 = arith.minimumf %43, %45 : vector<8x1xf32>
    %c0_26 = arith.constant 0 : index
    %c0_27 = arith.constant 0 : index
    %47 = vector.load %arg10[%c0_26, %c0_27] : memref<8x1xf32, #tpu.memory_space<vmem>>, vector<8x1xf32>
    tpu.vector_store %arg10[%c0_26, %c0_27], %46 {strides = array<i32>} : memref<8x1xf32, #tpu.memory_space<vmem>>, vector<8x1xf32>,
    %c0_28 = arith.constant 0 : index
    %c0_29 = arith.constant 0 : index
    %48 = vector.load %arg11[%c0_28, %c0_29] : memref<8x1xf32, #tpu.memory_space<vmem>>, vector<8x1xf32>
    %cst_30 = arith.constant dense<0xFF800000> : vector<8xf32>
    %49 = vector.multi_reduction <maximumf>, %31, %cst_30 [1] : vector<8x8xf32> to vector<8xf32>
    %50 = vector.shape_cast %49 : vector<8xf32> to vector<8x1xf32>
    %51 = arith.maximumf %48, %50 : vector<8x1xf32>
    %c0_31 = arith.constant 0 : index
    %c0_32 = arith.constant 0 : index
    %52 = vector.load %arg11[%c0_31, %c0_32] : memref<8x1xf32, #tpu.memory_space<vmem>>, vector<8x1xf32>
    tpu.vector_store %arg11[%c0_31, %c0_32], %51 {strides = array<i32>} : memref<8x1xf32, #tpu.memory_space<vmem>>, vector<8x1xf32>,
    %c0_i32_33 = arith.constant 0 : i32
    %53 = arith.cmpi eq, %arg1, %c0_i32_33 : i32
    %54 = arith.extui %53 : i1 to i32
    %c0_i32_34 = arith.constant 0 : i32
    %55 = arith.cmpi ne, %54, %c0_i32_34 : i32
    scf.if %55 {
      %c0_35 = arith.constant 0 : index
      %c0_36 = arith.constant 0 : index
      %56 = vector.load %arg9[%c0_35, %c0_36] : memref<8x1xf32, #tpu.memory_space<vmem>>, vector<8x1xf32>
      %c0_37 = arith.constant 0 : index
      %c0_38 = arith.constant 0 : index
      %57 = vector.load %arg10[%c0_37, %c0_38] : memref<8x1xf32, #tpu.memory_space<vmem>>, vector<8x1xf32>
      %c0_39 = arith.constant 0 : index
      %c0_40 = arith.constant 0 : index
      %58 = vector.load %arg11[%c0_39, %c0_40] : memref<8x1xf32, #tpu.memory_space<vmem>>, vector<8x1xf32>
      %cst_41 = arith.constant 0.000000e+00 : f32
      %59 = vector.broadcast %cst_41 : f32 to vector<8x1xf32>
      %60 = arith.cmpf oge, %56, %59 : vector<8x1xf32>
      %cst_42 = arith.constant 9.99999993E-9 : f32
      %61 = vector.broadcast %cst_42 : f32 to vector<8x1xf32>
      %62 = arith.addf %56, %61 : vector<8x1xf32>
      %63 = math.sqrt %62 : vector<8x1xf32>
      %cst_43 = arith.constant 0.000000e+00 : f32
      %64 = vector.broadcast %cst_43 : f32 to vector<8x1xf32>
      %65 = arith.select %60, %63, %64 : vector<8x1xi1>, vector<8x1xf32>
      %cst_44 = arith.constant 9.99999993E-9 : f32
      %66 = vector.broadcast %cst_44 : f32 to vector<8x1xf32>
      %67 = arith.addf %57, %66 : vector<8x1xf32>
      %68 = math.sqrt %67 : vector<8x1xf32>
      %cst_45 = arith.constant 9.99999993E-9 : f32
      %69 = vector.broadcast %cst_45 : f32 to vector<8x1xf32>
      %70 = arith.addf %58, %69 : vector<8x1xf32>
      %71 = math.sqrt %70 : vector<8x1xf32>
      %cst_46 = arith.constant 9.99999974E-5 : f32
      %72 = vector.broadcast %cst_46 : f32 to vector<8x1xf32>
      %73 = arith.addf %72, %71 : vector<8x1xf32>
      %74 = arith.minimumf %68, %73 : vector<8x1xf32>
      %75 = arith.subf %65, %74 : vector<8x1xf32>
      %cst_47 = arith.constant 1.000000e+00 : f32
      %76 = vector.broadcast %cst_47 : f32 to vector<8x1xf32>
      %77 = arith.addf %75, %76 : vector<8x1xf32>
      %cst_48 = arith.constant 0.000000e+00 : f32
      %78 = vector.broadcast %cst_48 : f32 to vector<8x1xf32>
      %79 = arith.maximumf %77, %78 : vector<8x1xf32>
      %c0_49 = arith.constant 0 : index
      %c0_50 = arith.constant 0 : index
      %80 = vector.load %arg8[%c0_49, %c0_50] : memref<8x1xf32, #tpu.memory_space<vmem>>, vector<8x1xf32>
      tpu.vector_store %arg8[%c0_49, %c0_50], %79 {strides = array<i32>} : memref<8x1xf32, #tpu.memory_space<vmem>>, vector<8x1xf32>,
    } else {
    }
    return
  }
  func.func @transform_0(%arg0: i32, %arg1: i32) -> (i32, i32) {
    %c0_i32 = arith.constant 0 : i32
    %c0_i32_0 = arith.constant 0 : i32
    return %arg0, %c0_i32 : i32, i32
  }
  func.func @transform_1(%arg0: i32, %arg1: i32) -> (i32, i32) {
    %c0_i32 = arith.constant 0 : i32
    %c0_i32_0 = arith.constant 0 : i32
    return %c0_i32, %arg1 : i32, i32
  }
  func.func @transform_2(%arg0: i32, %arg1: i32) -> (i32, i32) {
    %c0_i32 = arith.constant 0 : i32
    %c0_i32_0 = arith.constant 0 : i32
    return %arg0, %c0_i32 : i32, i32
  }
  func.func @transform_3(%arg0: i32, %arg1: i32) -> (i32, i32) {
    %c0_i32 = arith.constant 0 : i32
    %c0_i32_0 = arith.constant 0 : i32
    return %c0_i32, %arg1 : i32, i32
  }
  func.func @transform_4(%arg0: i32, %arg1: i32) -> (i32, i32) {
    %c0_i32 = arith.constant 0 : i32
    %c0_i32_0 = arith.constant 0 : i32
    return %arg0, %c0_i32 : i32, i32
  }
  func.func @transform_5(%arg0: i32, %arg1: i32) -> (i32, i32) {
    %c0_i32 = arith.constant 0 : i32
    %c0_i32_0 = arith.constant 0 : i32
    return %c0_i32, %arg1 : i32, i32
  }
  func.func @transform_6(%arg0: i32, %arg1: i32) -> (i32, i32) {
    %c0_i32 = arith.constant 0 : i32
    %c0_i32_0 = arith.constant 0 : i32
    return %arg0, %c0_i32 : i32, i32
  }
}

</mosaic_0001>

<llo_original>
// kernel: tpu_custom_call.1
$region0: #{tpu_custom_call.1}
  #allocation0 [shape = 'u32[]', space=smem, size = 0x4, offset = 0x4, fixed_abs, tag = 'smem constant byte address 0x4 - core index']
  #allocation1 [shape = 'u32[144,128]{1,0:T(1,128)}', space=vmem, size = 0x12000, scoped, tag = 'internal scratch']
  #allocation2 [shape = 'f32[8,1]{1,0:T(8,128)}', space=vmem, size = 0x1000, scoped, tag = 'scratch operand']
  #allocation3 [shape = 'f32[8,1]{1,0:T(8,128)}', space=vmem, size = 0x1000, scoped, tag = 'scratch operand']
  #allocation4 [shape = 'f32[8,1]{1,0:T(8,128)}', space=vmem, size = 0x1000, scoped, tag = 'scratch operand']
  %s0 = inlined_call_operand.vmem [shape: f32[8,32], index: 0, kind: input, shape index: {}]
  %s1 = inlined_call_operand.vmem [shape: f32[32,8], index: 1, kind: input, shape index: {}]
  %s2 = inlined_call_operand.vmem [shape: f32[8,1], index: 2, kind: input, shape index: {}]
  %s3 = inlined_call_operand.vmem [shape: f32[1,8], index: 3, kind: input, shape index: {}]
  %s4 = inlined_call_operand.vmem [shape: s32[8,1], index: 4, kind: input, shape index: {}]
  %s5 = inlined_call_operand.vmem [shape: s32[1,8], index: 5, kind: input, shape index: {}]
  %s6 = inlined_call_operand.vmem [shape: f32[8,1], index: 6, kind: output, shape index: {}]
  %s7 = sld [smem:[#allocation0]]
  $region42: #{tpu_custom_call.1} parent=0
    _
  %s9 = ssub.s32 1, %s7
  %s10 = scalar_select 0, %s9, %s7
  // Predicated region
  $region2: #{tpu_custom_call.1} parent=0 // pred_check
    _
  $region3: #{tpu_custom_call.1} parent=0 // pred_check_branch
    %12 = sbr.rel (0) target = $region5
  $region4: #{tpu_custom_call.1} parent=0 // pred_region
    _
  $region5: #{tpu_custom_call.1} parent=0 // pred_fallthru
    _
  // Predicated region
  $region6: #{tpu_custom_call.1} parent=0 // pred_check
    _
  $region7: #{tpu_custom_call.1} parent=0 // pred_check_branch
    %14 = sbr.rel (0) target = $region9
  $region8: #{tpu_custom_call.1} parent=0 // pred_region
    _
  $region9: #{tpu_custom_call.1} parent=0 // pred_fallthru
    _
  // Predicated region
  $region10: #{tpu_custom_call.1} parent=0 // pred_check
    _
  $region11: #{tpu_custom_call.1} parent=0 // pred_check_branch
    %16 = sbr.rel (0) target = $region13
  $region12: #{tpu_custom_call.1} parent=0 // pred_region
    _
  $region13: #{tpu_custom_call.1} parent=0 // pred_fallthru
    _
  // Predicated region
  $region14: #{tpu_custom_call.1} parent=0 // pred_check
    _
  $region15: #{tpu_custom_call.1} parent=0 // pred_check_branch
    %18 = sbr.rel (0) target = $region17
  $region16: #{tpu_custom_call.1} parent=0 // pred_region
    _
  $region17: #{tpu_custom_call.1} parent=0 // pred_fallthru
    _
  // Predicated region
  $region18: #{tpu_custom_call.1} parent=0 // pred_check
    _
  $region19: #{tpu_custom_call.1} parent=0 // pred_check_branch
    %20 = sbr.rel (0) target = $region21
  $region20: #{tpu_custom_call.1} parent=0 // pred_region
    _
  $region21: #{tpu_custom_call.1} parent=0 // pred_fallthru
    _
  // Predicated region
  $region22: #{tpu_custom_call.1} parent=0 // pred_check
    _
  $region23: #{tpu_custom_call.1} parent=0 // pred_check_branch
    %22 = sbr.rel (0) target = $region25
  $region24: #{tpu_custom_call.1} parent=0 // pred_region
    _
  $region25: #{tpu_custom_call.1} parent=0 // pred_fallthru
    _
  %p23 = scmp.eq.s32.totalorder 0, 0
  // Predicated region
  $region26: #{tpu_custom_call.1} parent=0 // pred_check
    %p24 = pneg %p23
  $region27: #{tpu_custom_call.1} parent=0 // pred_check_branch
    %26 = sbr.rel (%p24) target = $region29
  $region28: #{tpu_custom_call.1} parent=0 // pred_region
    %vm27 = vcmask 7168
    %28 = vst.msk [vmem:[#allocation2] sm:$0xff] %vm27, -inf
    %29 = vst.msk [vmem:[#allocation3] sm:$0xff] %vm27, inf
    %30 = vst.msk [vmem:[#allocation4] sm:$0xff] %vm27, -inf
  $region29: #{tpu_custom_call.1} parent=0 // pred_fallthru
    _
  %v31 = vld [vmem:[%s0] sm:$0xff]
  %v32 = vld [vmem:[%s1] sm:$0xff]
  %v33 = vld [vmem:[%s1 + $0x8] sm:$0xff]
  %v34 = vld [vmem:[%s1 + $0x10] sm:$0xff]
  %v35 = vld [vmem:[%s1 + $0x18] sm:$0xff]
  %vm36 = vcmask 261120
  %v38 = vsel %vm36, %v31, 0
  %40 = vmatprep.subr.mxu0 0.0
  %41 = vmatpush1.msra.mxu0 0.0
  %42 = vmatprep.subr.mxu0 0.0
  %43 = vmatpush1.msra.mxu0 0.0
  %44 = vmatprep.subr.mxu0 0.0
  %45 = vmatpush1.msra.mxu0 0.0
  %46 = vmatprep.subr.mxu0 0.0
  %47 = vmatpush1.msra.mxu0 0.0
  %48 = vmatprep.subr.mxu0 0.0
  %49 = vmatpush1.msra.mxu0 0.0
  %50 = vmatprep.subr.mxu0 0.0
  %51 = vmatpush1.msra.mxu0 0.0
  %52 = vmatprep.subr.mxu0 0.0
  %53 = vmatpush1.msra.mxu0 0.0
  %54 = vmatprep.subr.mxu0 0.0
  %55 = vmatpush1.msra.mxu0 0.0
  %56 = vmatprep.subr.mxu0 0.0
  %57 = vmatpush1.msra.mxu0 0.0
  %58 = vmatprep.subr.mxu0 0.0
  %59 = vmatpush1.msra.mxu0 0.0
  %60 = vmatprep.subr.mxu0 0.0
  %61 = vmatpush1.msra.mxu0 0.0
  %62 = vmatprep.subr.mxu0 0.0
  %63 = vmatpush1.msra.mxu0 0.0
  %64 = vmatprep.subr.mxu0 0.0
  %65 = vmatpush1.msra.mxu0 %v35
  %66 = vmatprep.subr.mxu0 0.0
  %67 = vmatpush1.msra.mxu0 %v34
  %68 = vmatprep.subr.mxu0 0.0
  %69 = vmatpush1.msra.mxu0 %v33
  %70 = vmatprep.subr.mxu0 0.0
  %71 = vmatpush1.msra.mxu0 %v32
  %72 = vmatprep.subr.mxu0 0.0
  %73 = vmatpush2.msra.mxu0 0.0
  %74 = vmatprep.subr.mxu0 0.0
  %75 = vmatpush2.msra.mxu0 0.0
  %76 = vmatprep.subr.mxu0 0.0
  %77 = vmatpush2.msra.mxu0 0.0
  %78 = vmatprep.subr.mxu0 0.0
  %79 = vmatpush2.msra.mxu0 0.0
  %80 = vmatprep.subr.mxu0 0.0
  %81 = vmatpush2.msra.mxu0 0.0
  %82 = vmatprep.subr.mxu0 0.0
  %83 = vmatpush2.msra.mxu0 0.0
  %84 = vmatprep.subr.mxu0 0.0
  %85 = vmatpush2.msra.mxu0 0.0
  %86 = vmatprep.subr.mxu0 0.0
  %87 = vmatpush2.msra.mxu0 0.0
  %88 = vmatprep.subr.mxu0 0.0
  %89 = vmatpush2.msra.mxu0 0.0
  %90 = vmatprep.subr.mxu0 0.0
  %91 = vmatpush2.msra.mxu0 0.0
  %92 = vmatprep.subr.mxu0 0.0
  %93 = vmatpush2.msra.mxu0 0.0
  %94 = vmatprep.subr.mxu0 0.0
  %95 = vmatpush2.msra.mxu0 0.0
  %96 = vmatprep.subr.mxu0 0.0
  %97 = vmatpush2.msra.mxu0 0.0
  %98 = vmatprep.subr.mxu0 0.0
  %99 = vmatpush2.msra.mxu0 0.0
  %100 = vmatprep.subr.mxu0 0.0
  %101 = vmatpush2.msra.mxu0 0.0
  %102 = vmatprep.subr.mxu0 0.0
  %103 = vmatpush2.msra.mxu0 0.0
  %104 = vmatprep.mubr.f32.mxu0 0.0
  %105 = vmatmul.mubr.f32.gmra.mxu0 %v38
  %v106 = vpop.f32.mrf.mxu0
  %v107 = vadd.f32 0.0, %v106
  %v108 = vpop.f32.mrf.mxu0
  %109 = vdwg.mxu0
  %v110 = vld [vmem:[%s2] sm:$0xff]
  %112 = vset.pattern.permute.xlu0 0
  %113 = vperm.xlu0 %112, %v110
  %v114 = vpop.permute.xlu0 %113
  %v116 = vadd.f32 %v114, %v107
  %v117 = vld [vmem:[%s3] sm:$0x1]
  %v119 = vlaneseq
  %v120 = vshrl.u32 %v119, 7
  %v121 = vsub.s32 0, %v120
  %v122 = vrot.slane %v117, %v121
  %v124 = vadd.f32 %v116, %v122
  %v125 = vmax.f32 %v124, 0.0
  %s126 = smul.u32 0, 8
  %v127 = vlaneseq
  %v128 = vshrl.u32 %v127, 7
  %v129 = vstv %s126
  %v130 = vadd.s32 %v129, %v128
  %s131 = smul.u32 0, 8
  %v132 = vlaneseq
  %v133 = vand.u32 %v132, 127
  %v134 = vstv %s131
  %v135 = vadd.s32 %v134, %v133
  %vm136 = vcmp.eq.s32.totalorder %v130, %v135
  %v137 = vld [vmem:[%s4] sm:$0xff]
  %v138 = vld [vmem:[%s5] sm:$0x1]
  %139 = vset.pattern.permute.xlu0 0
  %140 = vperm.xlu0 %139, %v137
  %v141 = vpop.permute.xlu0 %140
  %v142 = vlaneseq
  %v143 = vshrl.u32 %v142, 7
  %v144 = vsub.s32 0, %v143
  %v145 = vrot.slane %v138, %v144
  %vm146 = vcmp.eq.s32.totalorder %v141, %v145
  %v147 = vsel %vm136, 0.0, %v125
  %vm148 = vmxor %vm136, 1
  %vm149 = vmand %vm146, %vm148
  %v150 = vsel %vm149, %v147, -inf
  %v151 = vsel %vm146, inf, %v147
  %v152 = vld [vmem:[#allocation2] sm:$0xff]
  %vm153 = vcmask 64512
  %v154 = vsel %vm153, %v150, -inf
  %155 = vmax.xlane.f32.xlu0 %v154
  %v156 = vpop.xlane.xlu0 %155
  %v157 = vmax.f32 %v152, %v156
  %vm158 = vcmask 7168
  %159 = vst.msk [vmem:[#allocation2] sm:$0xff] %vm158, %v157
  %v160 = vld [vmem:[#allocation3] sm:$0xff]
  %v161 = vsel %vm153, %v151, inf
  %162 = vmin.xlane.f32.xlu0 %v161
  %v163 = vpop.xlane.xlu0 %162
  %v164 = vmin.f32 %v160, %v163
  %165 = vst.msk [vmem:[#allocation3] sm:$0xff] %vm158, %v164
  %v166 = vld [vmem:[#allocation4] sm:$0xff]
  %v167 = vsel %vm153, %v147, -inf
  %168 = vmax.xlane.f32.xlu0 %v167
  %v169 = vpop.xlane.xlu0 %168
  %v170 = vmax.f32 %v166, %v169
  %171 = vst.msk [vmem:[#allocation4] sm:$0xff] %vm158, %v170
  // Predicated region
  $region30: #{tpu_custom_call.1} parent=0 // pred_check
    %p172 = pneg %p23
  $region31: #{tpu_custom_call.1} parent=0 // pred_check_branch
    %174 = sbr.rel (%p172) target = $region33
  $region32: #{tpu_custom_call.1} parent=0 // pred_region
    %v175 = vld [vmem:[#allocation2] sm:$0xff]
    %v176 = vld [vmem:[#allocation3] sm:$0xff]
    %v177 = vld [vmem:[#allocation4] sm:$0xff]
    %vm178 = vcmp.ge.f32.partialorder %v175, 0.0
    %v179 = vadd.f32 %v175, 1e-08
    %v180 = vrsqrt.pop %v179
    %v181 = vmul.f32 %v179, %v180
    %vm182 = vcmp.eq.f32.partialorder %v179, inf
    %v183 = vsel %vm182, %v179, %v181
    %vm184 = vcmp.eq.f32.partialorder %v179, 0.0
    %v185 = vand.u32 %v179, 2147483648
    %v186 = vsel %vm184, %v185, %v183
    %v187 = vsel %vm178, %v186, 0.0
    %v188 = vadd.f32 %v176, 1e-08
    %v189 = vrsqrt.pop %v188
    %v190 = vmul.f32 %v188, %v189
    %vm191 = vcmp.eq.f32.partialorder %v188, inf
    %v192 = vsel %vm191, %v188, %v190
    %vm193 = vcmp.eq.f32.partialorder %v188, 0.0
    %v194 = vand.u32 %v188, 2147483648
    %v195 = vsel %vm193, %v194, %v192
    %v196 = vadd.f32 %v177, 1e-08
    %v197 = vrsqrt.pop %v196
    %v198 = vmul.f32 %v196, %v197
    %vm199 = vcmp.eq.f32.partialorder %v196, inf
    %v200 = vsel %vm199, %v196, %v198
    %vm201 = vcmp.eq.f32.partialorder %v196, 0.0
    %v202 = vand.u32 %v196, 2147483648
    %v203 = vsel %vm201, %v202, %v200
    %v204 = vadd.f32 %v203, 0.0001
    %v205 = vmin.f32 %v195, %v204
    %v206 = vsub.f32 %v187, %v205
    %v207 = vadd.f32 %v206, 1.0
    %v208 = vmax.f32 %v207, 0.0
    %209 = vst.msk [vmem:[%s6] sm:$0xff] %vm158, %v208
  $region33: #{tpu_custom_call.1} parent=0 // pred_fallthru
    _
  // Predicated region
  $region34: #{tpu_custom_call.1} parent=0 // pred_check
    _
  $region35: #{tpu_custom_call.1} parent=0 // pred_check_branch
    %211 = sbr.rel (0) target = $region37
  $region36: #{tpu_custom_call.1} parent=0 // pred_region
    _
  $region37: #{tpu_custom_call.1} parent=0 // pred_fallthru
    _
  // Predicated region
  $region38: #{tpu_custom_call.1} parent=0 // pred_check
    _
  $region39: #{tpu_custom_call.1} parent=0 // pred_check_branch
    %213 = sbr.rel (0) target = $region41
  $region40: #{tpu_custom_call.1} parent=0 // pred_region
    _
  $region41: #{tpu_custom_call.1} parent=0 // pred_fallthru
    _

</llo_original>
